<compile_context>
chip_gen: v6e
topology: v6e:2x2x1
jax: 0.10.0
libtpu: 0.0.40
codegen_flags: <defaults>
</compile_context>

<pallas_src>
import functools
import math

import jax
import jax.numpy as jnp
from jax.experimental import pallas as pl
from jax.experimental.pallas import tpu as pltpu


def _packed_gather_kernel(sel_ref, x_ref, tab_ref, o_ref, *, cols, pack):
    # sel_ref: VMEM int32[tn, pack]     precomputed idx + p*E (clamped)
    # x_ref:   VMEM   x[tn, pack*D]     lane-dense packed x tile
    # tab_ref: VMEM tab[pack*E, pack*D] block-diagonal replicated table (resident)
    # o_ref:   VMEM   x[tn, pack*D]
    tn = x_ref.shape[0]
    lane = jax.lax.broadcasted_iota(jnp.int32, (tn, cols), 1)
    sel = sel_ref[...]

    # One-hot built as a single bool accumulate + one cast (sub-blocks p are
    # disjoint column ranges, so OR is exact).
    hit = lane == sel[:, 0:1]
    for p in range(1, pack):
        hit = hit | (lane == sel[:, p:p + 1])
    one_hot = hit.astype(jnp.float32)

    # Exact MXU gather: one nonzero product per output lane; HIGHEST precision
    # pins full-f32 passes (no silent bf16 truncation of table values).
    gathered = jnp.dot(
        one_hot,
        tab_ref[...].astype(jnp.float32),
        precision=jax.lax.Precision.HIGHEST,
        preferred_element_type=jnp.float32,
    )
    o_ref[...] = (x_ref[...].astype(jnp.float32) + gathered).astype(o_ref.dtype)


def _sliced_gather_kernel(idx_ref, x_ref, tab_ref, o_ref, *, num_embeddings, pack, d):
    # Large-E fallback: un-replicated (E, D) table, P narrow dots written into
    # lane slices [p*D, (p+1)*D) of the output tile.
    tn = x_ref.shape[0]
    lane = jax.lax.broadcasted_iota(jnp.int32, (tn, num_embeddings), 1)
    idx = idx_ref[...]
    tab = tab_ref[...].astype(jnp.float32)
    for p in range(pack):
        one_hot = (lane == idx[:, p:p + 1]).astype(jnp.float32)
        g = jnp.dot(
            one_hot, tab,
            precision=jax.lax.Precision.HIGHEST,
            preferred_element_type=jnp.float32,
        )
        xs = x_ref[:, p * d:(p + 1) * d].astype(jnp.float32)
        o_ref[:, p * d:(p + 1) * d] = (xs + g).astype(o_ref.dtype)


def spatial_embedding(x, in_chan_matrix, embed_table, *, tn_max=4096):
    """x: [B, C, D] float, in_chan_matrix: [B, C] int, embed_table: [E, D]."""
    B, C, D = x.shape
    E, D2 = embed_table.shape
    assert D == D2
    N = B * C

    # Lane-dense packing factor: P*D is a multiple of 128 (full-lane stores).
    P = math.lcm(D, 128) // D
    if P > 16:
        # Awkward D: accept masked stores rather than huge multi-vreg lane rows.
        P = 1
    lane_w = P * D

    x_flat = x.reshape(N, D)
    idx_flat = jnp.clip(in_chan_matrix.reshape(N).astype(jnp.int32), 0, E - 1)

    rem = (-N) % P
    if rem:
        # Rare ragged case: pad at most P-1 rows (single copy). Common case
        # (N % P == 0) is copy-free: only reshapes below.
        x_flat = jnp.pad(x_flat, ((0, rem), (0, 0)))
        idx_flat = jnp.pad(idx_flat, (0, rem))
    Np = N + rem
    n_rows = Np // P

    x_packed = x_flat.reshape(n_rows, lane_w)       # free reshape (contiguous)
    idx_packed = idx_flat.reshape(n_rows, P)

    itemsize = jnp.dtype(x.dtype).itemsize
    tab_itemsize = jnp.dtype(embed_table.dtype).itemsize

    # Path selection: replicated block-diagonal table only while it stays small
    # (keeps the kernel HBM-bound; avoids P^2 table blow-up / MXU-bound regime
    # for large E -- conservative threshold so v5e also stays HBM-bound).
    replicated = (P == 1) or (P * P * E * D * tab_itemsize <= (4 << 20))
    if replicated:
        if P > 1:
            eye = jnp.eye(P, dtype=embed_table.dtype)
            table = (eye[:, None, :, None] * embed_table[None, :, None, :]
                     ).reshape(P * E, P * D)
            # Precompute sel = idx + p*E (drops iota + add from the kernel).
            sel = idx_packed + (jnp.arange(P, dtype=jnp.int32) * E)[None, :]
        else:
            table = embed_table
            sel = idx_packed
        kernel = functools.partial(_packed_gather_kernel, cols=P * E, pack=P)
    else:
        table = embed_table
        sel = idx_packed
        kernel = functools.partial(
            _sliced_gather_kernel, num_embeddings=E, pack=P, d=D)
        # TODO(synk): for very large E a DMA-gather path would beat the one-hot dots.
    table_rows, table_cols = table.shape
    table_bytes = table.size * tab_itemsize

    # Row-tile selection (packed rows): dtype-aware sublane rounding, biggest
    # tile within an ~8 MiB streaming budget, and cap so the grid keeps >= 2
    # steps when possible (megacore sharding on v7x).
    sub = max(8, 32 // itemsize)                       # f32:8  bf16:16  int8:32
    bytes_per_row = 2 * lane_w * itemsize + 128 * 4    # x + out + lane-padded idx
    rows_cap = max(sub, ((8 << 20) // bytes_per_row) // sub * sub)
    half = pl.cdiv(pl.cdiv(n_rows, 2), sub) * sub      # encourage >= 2 grid steps
    tn = max(sub, min(tn_max, rows_cap, half))
    # Keep (double-buffered tiles + double-buffered table) under ~28 MiB so the
    # 32 MiB scoped limit holds on every generation (v7x has 64 MiB physical).
    while tn > sub and (2 * tn * bytes_per_row + 2 * table_bytes) > (28 << 20):
        tn = max(sub, (tn // 2 // sub) * sub)

    grid = (pl.cdiv(n_rows, tn),)   # ragged last tile handled by Pallas masking

    out_packed = pl.pallas_call(
        kernel,
        out_shape=jax.ShapeDtypeStruct((n_rows, lane_w), x.dtype),
        grid_spec=pltpu.PrefetchScalarGridSpec(
            num_scalar_prefetch=0,
            grid=grid,
            in_specs=[
                # per-tile packed (pre-offset) channel ids
                pl.BlockSpec((tn, P), lambda i: (i, 0)),
                # per-tile lane-dense x rows
                pl.BlockSpec((tn, lane_w), lambda i: (i, 0)),
                # full embedding table, resident across all grid steps
                pl.BlockSpec((table_rows, table_cols), lambda i: (0, 0)),
            ],
            out_specs=pl.BlockSpec((tn, lane_w), lambda i: (i, 0)),
        ),
        compiler_params=pltpu.CompilerParams(
            dimension_semantics=("parallel",),
            vmem_limit_bytes=32 * 1024 * 1024,   # above v5e's 16 MiB default
        ),
    )(sel, x_packed, table)

    out_flat = out_packed.reshape(Np, D)            # free reshape
    if rem:
        out_flat = out_flat[:N]
    return out_flat.reshape(B, C, D)


def spatial_embedding_ref(x, in_chan_matrix, embed_table):
    return x + embed_table[in_chan_matrix]


if __name__ == "__main__":
    # Small shapes consistent with the module's forward.
    B, C, D = 2, 16, 32          # batch, channels (seq of channel ids), embed_dim
    num_embeddings = 16

    key = jax.random.PRNGKey(0)
    kx, kw, ki = jax.random.split(key, 3)

    x = jax.random.normal(kx, (B, C, D), dtype=jnp.float32)
    # Deterministic synthetic "nn.Embedding" weight (not a checkpoint).
    embed_table = jax.random.normal(kw, (num_embeddings, D), dtype=jnp.float32)
    in_chan_matrix = jax.random.randint(ki, (B, C), 0, num_embeddings, dtype=jnp.int32)

    out = spatial_embedding(x, in_chan_matrix, embed_table)
    out = jax.block_until_ready(out)

    ref = spatial_embedding_ref(x, in_chan_matrix, embed_table)
    assert out.shape == (B, C, D)
    assert jnp.allclose(out, ref, atol=1e-6, rtol=1e-6), "mismatch vs reference"

    print("KERNEL_OK")
</pallas_src>

<mosaic_0001>
module attributes {stable_mosaic.version = 11 : i64} {
  func.func @_packed_gather_kernel(%arg0: i32, %arg1: memref<8x4xi32, #tpu.memory_space<vmem>>, %arg2: memref<8x128xf32, #tpu.memory_space<vmem>>, %arg3: memref<64x128xf32, #tpu.memory_space<vmem>>, %arg4: memref<8x128xf32, #tpu.memory_space<vmem>>) attributes {dimension_semantics = [#tpu.dimension_semantics<parallel>], iteration_bounds = array<i64: 1>, scalar_prefetch = 0 : i64, scratch_operands = 0 : i64, tpu.core_type = #tpu.core_type<tc>, window_params = [{transform_indices = @transform_0, window_bounds = array<i64: 8, 4>}, {transform_indices = @transform_1, window_bounds = array<i64: 8, 128>}, {pipeline_mode = #tpu.pipeline_mode<synchronous>, transform_indices = @transform_2, window_bounds = array<i64: 64, 128>}, {transform_indices = @transform_3, window_bounds = array<i64: 8, 128>}]} {
    %0 = tpu.iota {dimensions = array<i32: 1>} : vector<8x64xi32>
    %c0 = arith.constant 0 : index
    %c0_0 = arith.constant 0 : index
    %1 = vector.load %arg1[%c0, %c0_0] : memref<8x4xi32, #tpu.memory_space<vmem>>, vector<8x4xi32>
    %2 = vector.extract_strided_slice %1 {offsets = [0, 0], sizes = [8, 1], strides = [1, 1]} : vector<8x4xi32> to vector<8x1xi32>
    %3 = vector.broadcast %2 : vector<8x1xi32> to vector<8x64xi32>
    %4 = arith.cmpi eq, %0, %3 : vector<8x64xi32>
    %5 = vector.extract_strided_slice %1 {offsets = [0, 1], sizes = [8, 1], strides = [1, 1]} : vector<8x4xi32> to vector<8x1xi32>
    %6 = vector.broadcast %5 : vector<8x1xi32> to vector<8x64xi32>
    %7 = arith.cmpi eq, %0, %6 : vector<8x64xi32>
    %8 = arith.ori %4, %7 : vector<8x64xi1>
    %9 = vector.extract_strided_slice %1 {offsets = [0, 2], sizes = [8, 1], strides = [1, 1]} : vector<8x4xi32> to vector<8x1xi32>
    %10 = vector.broadcast %9 : vector<8x1xi32> to vector<8x64xi32>
    %11 = arith.cmpi eq, %0, %10 : vector<8x64xi32>
    %12 = arith.ori %8, %11 : vector<8x64xi1>
    %13 = vector.extract_strided_slice %1 {offsets = [0, 3], sizes = [8, 1], strides = [1, 1]} : vector<8x4xi32> to vector<8x1xi32>
    %14 = vector.broadcast %13 : vector<8x1xi32> to vector<8x64xi32>
    %15 = arith.cmpi eq, %0, %14 : vector<8x64xi32>
    %16 = arith.ori %12, %15 : vector<8x64xi1>
    %17 = arith.extui %16 : vector<8x64xi1> to vector<8x64xi32>
    %18 = arith.sitofp %17 : vector<8x64xi32> to vector<8x64xf32>
    %c0_1 = arith.constant 0 : index
    %c0_2 = arith.constant 0 : index
    %19 = vector.load %arg3[%c0_1, %c0_2] : memref<64x128xf32, #tpu.memory_space<vmem>>, vector<64x128xf32>
    %cst = arith.constant dense<0.000000e+00> : vector<8x128xf32>
    %20 = tpu.matmul %18, %19, %cst {dimension_numbers = #tpu.dot_dimension_numbers<[1], [0], [0], [1], [0, 0, 1, 1], [], []>, precision = #tpu.contract_precision<fp32>} : vector<8x64xf32>, vector<64x128xf32>, vector<8x128xf32> -> vector<8x128xf32>
    %c0_3 = arith.constant 0 : index
    %c0_4 = arith.constant 0 : index
    %21 = vector.load %arg2[%c0_3, %c0_4] : memref<8x128xf32, #tpu.memory_space<vmem>>, vector<8x128xf32>
    %22 = arith.addf %21, %20 : vector<8x128xf32>
    %c0_5 = arith.constant 0 : index
    %c0_6 = arith.constant 0 : index
    %23 = vector.load %arg4[%c0_5, %c0_6] : memref<8x128xf32, #tpu.memory_space<vmem>>, vector<8x128xf32>
    tpu.vector_store %arg4[%c0_5, %c0_6], %22 {strides = array<i32>} : memref<8x128xf32, #tpu.memory_space<vmem>>, vector<8x128xf32>,
    return
  }
  func.func @transform_0(%arg0: i32) -> (i32, i32) {
    %c0_i32 = arith.constant 0 : i32
    %c0_i32_0 = arith.constant 0 : i32
    return %arg0, %c0_i32 : i32, i32
  }
  func.func @transform_1(%arg0: i32) -> (i32, i32) {
    %c0_i32 = arith.constant 0 : i32
    %c0_i32_0 = arith.constant 0 : i32
    return %arg0, %c0_i32 : i32, i32
  }
  func.func @transform_2(%arg0: i32) -> (i32, i32) {
    %c0_i32 = arith.constant 0 : i32
    %c0_i32_0 = arith.constant 0 : i32
    %c0_i32_1 = arith.constant 0 : i32
    return %c0_i32, %c0_i32_0 : i32, i32
  }
  func.func @transform_3(%arg0: i32) -> (i32, i32) {
    %c0_i32 = arith.constant 0 : i32
    %c0_i32_0 = arith.constant 0 : i32
    return %arg0, %c0_i32 : i32, i32
  }
}

</mosaic_0001>

<llo_original>
// kernel: tpu_custom_call.1
$region0: #{tpu_custom_call.1}
  #allocation0 [shape = 'u32[]', space=smem, size = 0x4, offset = 0x4, fixed_abs, tag = 'smem constant byte address 0x4 - core index']
  #allocation1 [shape = 'u32[144,128]{1,0:T(1,128)}', space=vmem, size = 0x12000, scoped, tag = 'internal scratch']
  %s0 = inlined_call_operand.vmem [shape: s32[8,4], index: 0, kind: input, shape index: {}]
  %s1 = inlined_call_operand.vmem [shape: f32[8,128], index: 1, kind: input, shape index: {}]
  %s2 = inlined_call_operand.hbm [shape: f32[64,128], index: 2, kind: input, shape index: {}]
  %s3 = inlined_call_operand.hbm [shape: f32[8,128], index: 3, kind: output, shape index: {}]
  %s4 = sld [smem:[#allocation0]]
  $region26: #{tpu_custom_call.1} parent=0
    _
  %s6 = ssub.s32 1, %s4
  %s7 = scalar_select 0, %s6, %s4
  $region1: #{tpu_custom_call.1} parent=0
    #allocation2 [shape = 'u8[32768]{0}', space=vmem, size = 0x8000, scoped, tag = 'input window, operand 2, single buffered']
    #allocation3 [shape = 's32[1]{0}', space=sflag, size = 0x4, scoped, tag = 'scoped memory for tpu_custom_call.1']
    #allocation4 [shape = 's32[1]{0}', space=sflag, size = 0x4, scoped, tag = 'scoped memory for tpu_custom_call.1']
    #allocation5 [shape = 'u8[4096]{0}', space=vmem, size = 0x1000, scoped, tag = 'output window, operand 0, single buffered']
    %8 = vsyncpa [#allocation3], 0
    %9 = vsyncpa [#allocation4], 0
    // Predicated region
    $region2: #{tpu_custom_call.1} parent=1 // pred_check
      _
    $region3: #{tpu_custom_call.1} parent=1 // pred_check_branch
      %11 = sbr.rel (0) target = $region5
    $region4: #{tpu_custom_call.1} parent=1 // pred_region
      _
    $region5: #{tpu_custom_call.1} parent=1 // pred_fallthru
      _
    // Predicated region
    $region6: #{tpu_custom_call.1} parent=1 // pred_check
      _
    $region7: #{tpu_custom_call.1} parent=1 // pred_check_branch
      %13 = sbr.rel (0) target = $region9
    $region8: #{tpu_custom_call.1} parent=1 // pred_region
      _
    $region9: #{tpu_custom_call.1} parent=1 // pred_fallthru
      _
    // Predicated region
    $region10: #{tpu_custom_call.1} parent=1 // pred_check
      _
    $region11: #{tpu_custom_call.1} parent=1 // pred_check_branch
      %15 = sbr.rel (0) target = $region13
    $region12: #{tpu_custom_call.1} parent=1 // pred_region
      %s17 = ssub.s32 1024, 1024
      %18 = vsyncadd [#allocation3], %s17
      %s19 = sshll.u32 [#allocation2], 4
      %s20 = int_to_ptr.vmem [resolvable:$true] %s19
      %25 = dma.hbm_to_vmem [thread:$0]  %s2, 1024, %s20, [#allocation3], 128, 128, 8
    $region13: #{tpu_custom_call.1} parent=1 // pred_fallthru
      _
    // Predicated region
    $region14: #{tpu_custom_call.1} parent=1 // pred_check
      _
    $region15: #{tpu_custom_call.1} parent=1 // pred_check_branch
      %27 = sbr.rel (0) target = $region17
    $region16: #{tpu_custom_call.1} parent=1 // pred_region
      %28 = dma.done [#allocation3], 1024
    $region17: #{tpu_custom_call.1} parent=1 // pred_fallthru
      _
    %v29 = vlaneseq
    %v30 = vand.u32 %v29, 127
    %v31 = vld [vmem:[%s0] sm:$0xff]
    %32 = vset.pattern.permute.xlu0 0
    %33 = vperm.xlu0 %32, %v31
    %v34 = vpop.permute.xlu0 %33
    %vm35 = vcmp.eq.s32.totalorder %v30, %v34
    %36 = vset.pattern.permute.xlu0 1
    %37 = vperm.xlu0 %36, %v31
    %v38 = vpop.permute.xlu0 %37
    %vm39 = vcmp.eq.s32.totalorder %v30, %v38
    %vm40 = vmor %vm35, %vm39
    %41 = vset.pattern.permute.xlu0 2
    %42 = vperm.xlu0 %41, %v31
    %v43 = vpop.permute.xlu0 %42
    %vm44 = vcmp.eq.s32.totalorder %v30, %v43
    %vm45 = vmor %vm40, %vm44
    %46 = vset.pattern.permute.xlu0 3
    %47 = vperm.xlu0 %46, %v31
    %v48 = vpop.permute.xlu0 %47
    %vm49 = vcmp.eq.s32.totalorder %v30, %v48
    %vm50 = vmor %vm45, %vm49
    %v51 = vsel %vm50, 1, 0
    %v52 = vcvt.s32.f32 %v51
    %v53 = vld [vmem:[#allocation2] sm:$0xff]
    %v54 = vld [vmem:[#allocation2 + $0x8] sm:$0xff]
    %v55 = vld [vmem:[#allocation2 + $0x10] sm:$0xff]
    %v56 = vld [vmem:[#allocation2 + $0x18] sm:$0xff]
    %v57 = vld [vmem:[#allocation2 + $0x20] sm:$0xff]
    %v58 = vld [vmem:[#allocation2 + $0x28] sm:$0xff]
    %v59 = vld [vmem:[#allocation2 + $0x30] sm:$0xff]
    %v60 = vld [vmem:[#allocation2 + $0x38] sm:$0xff]
    %vm61 = vcmask 523264
    %v63 = vsel %vm61, %v52, 0
    %65 = vmatprep.subr.mxu0 0.0
    %66 = vmatpush1.msra.mxu0 0.0
    %67 = vmatprep.subr.mxu0 0.0
    %68 = vmatpush1.msra.mxu0 0.0
    %69 = vmatprep.subr.mxu0 0.0
    %70 = vmatpush1.msra.mxu0 0.0
    %71 = vmatprep.subr.mxu0 0.0
    %72 = vmatpush1.msra.mxu0 0.0
    %73 = vmatprep.subr.mxu0 0.0
    %74 = vmatpush1.msra.mxu0 0.0
    %75 = vmatprep.subr.mxu0 0.0
    %76 = vmatpush1.msra.mxu0 0.0
    %77 = vmatprep.subr.mxu0 0.0
    %78 = vmatpush1.msra.mxu0 0.0
    %79 = vmatprep.subr.mxu0 0.0
    %80 = vmatpush1.msra.mxu0 0.0
    %81 = vmatprep.subr.mxu0 0.0
    %v82 = vand.u32 %v60, 4294901760
    %83 = vmatpush1.msra.mxu0 %v82
    %84 = vmatprep.subr.mxu0 0.0
    %v85 = vand.u32 %v59, 4294901760
    %86 = vmatpush1.msra.mxu0 %v85
    %87 = vmatprep.subr.mxu0 0.0
    %v88 = vand.u32 %v58, 4294901760
    %89 = vmatpush1.msra.mxu0 %v88
    %90 = vmatprep.subr.mxu0 0.0
    %v91 = vand.u32 %v57, 4294901760
    %92 = vmatpush1.msra.mxu0 %v91
    %93 = vmatprep.subr.mxu0 0.0
    %v94 = vand.u32 %v56, 4294901760
    %95 = vmatpush1.msra.mxu0 %v94
    %96 = vmatprep.subr.mxu0 0.0
    %v97 = vand.u32 %v55, 4294901760
    %98 = vmatpush1.msra.mxu0 %v97
    %99 = vmatprep.subr.mxu0 0.0
    %v100 = vand.u32 %v54, 4294901760
    %101 = vmatpush1.msra.mxu0 %v100
    %102 = vmatprep.subr.mxu0 0.0
    %v103 = vand.u32 %v53, 4294901760
    %104 = vmatpush1.msra.mxu0 %v103
    %105 = vmatprep.subr.mxu0 0.0
    %106 = vmatpush2.msra.mxu0 0.0
    %107 = vmatprep.subr.mxu0 0.0
    %108 = vmatpush2.msra.mxu0 0.0
    %109 = vmatprep.subr.mxu0 0.0
    %110 = vmatpush2.msra.mxu0 0.0
    %111 = vmatprep.subr.mxu0 0.0
    %112 = vmatpush2.msra.mxu0 0.0
    %113 = vmatprep.subr.mxu0 0.0
    %114 = vmatpush2.msra.mxu0 0.0
    %115 = vmatprep.subr.mxu0 0.0
    %116 = vmatpush2.msra.mxu0 0.0
    %117 = vmatprep.subr.mxu0 0.0
    %118 = vmatpush2.msra.mxu0 0.0
    %119 = vmatprep.subr.mxu0 0.0
    %120 = vmatpush2.msra.mxu0 0.0
    %121 = vmatprep.subr.mxu0 0.0
    %122 = vmatpush2.msra.mxu0 0.0
    %123 = vmatprep.subr.mxu0 0.0
    %124 = vmatpush2.msra.mxu0 0.0
    %125 = vmatprep.subr.mxu0 0.0
    %126 = vmatpush2.msra.mxu0 0.0
    %127 = vmatprep.subr.mxu0 0.0
    %128 = vmatpush2.msra.mxu0 0.0
    %129 = vmatprep.subr.mxu0 0.0
    %130 = vmatpush2.msra.mxu0 0.0
    %131 = vmatprep.subr.mxu0 0.0
    %132 = vmatpush2.msra.mxu0 0.0
    %133 = vmatprep.subr.mxu0 0.0
    %134 = vmatpush2.msra.mxu0 0.0
    %135 = vmatprep.subr.mxu0 0.0
    %136 = vmatpush2.msra.mxu0 0.0
    %137 = vmatprep.mubr.f32.mxu0 0.0
    %v138 = vand.u32 %v63, 4294901760
    %v139 = vsub.f32 %v63, %v138
    %v140 = vand.u32 %v139, 4294901760
    %v141 = vsub.f32 %v139, %v140
    %v142 = vand.u32 %v141, 4294901760
    %143 = vmatmul.mubr.f32.gmra.mxu0 %v142
    %v144 = vpop.f32.mrf.mxu0
    %v145 = vadd.f32 0.0, %v144
    %v146 = vpop.f32.mrf.mxu0
    %147 = vdwg.mxu0
    %148 = vmatprep.subr.mxu0 0.0
    %149 = vmatpush1.msra.mxu0 0.0
    %150 = vmatprep.subr.mxu0 0.0
    %151 = vmatpush1.msra.mxu0 0.0
    %152 = vmatprep.subr.mxu0 0.0
    %153 = vmatpush1.msra.mxu0 0.0
    %154 = vmatprep.subr.mxu0 0.0
    %155 = vmatpush1.msra.mxu0 0.0
    %156 = vmatprep.subr.mxu0 0.0
    %157 = vmatpush1.msra.mxu0 0.0
    %158 = vmatprep.subr.mxu0 0.0
    %159 = vmatpush1.msra.mxu0 0.0
    %160 = vmatprep.subr.mxu0 0.0
    %161 = vmatpush1.msra.mxu0 0.0
    %162 = vmatprep.subr.mxu0 0.0
    %163 = vmatpush1.msra.mxu0 0.0
    %164 = vmatprep.subr.mxu0 0.0
    %v165 = vand.u32 %v60, 4294901760
    %v166 = vsub.f32 %v60, %v165
    %v167 = vand.u32 %v166, 4294901760
    %v168 = vsub.f32 %v166, %v167
    %v169 = vand.u32 %v168, 4294901760
    %170 = vmatpush1.msra.mxu0 %v169
    %171 = vmatprep.subr.mxu0 0.0
    %v172 = vand.u32 %v59, 4294901760
    %v173 = vsub.f32 %v59, %v172
    %v174 = vand.u32 %v173, 4294901760
    %v175 = vsub.f32 %v173, %v174
    %v176 = vand.u32 %v175, 4294901760
    %177 = vmatpush1.msra.mxu0 %v176
    %178 = vmatprep.subr.mxu0 0.0
    %v179 = vand.u32 %v58, 4294901760
    %v180 = vsub.f32 %v58, %v179
    %v181 = vand.u32 %v180, 4294901760
    %v182 = vsub.f32 %v180, %v181
    %v183 = vand.u32 %v182, 4294901760
    %184 = vmatpush1.msra.mxu0 %v183
    %185 = vmatprep.subr.mxu0 0.0
    %v186 = vand.u32 %v57, 4294901760
    %v187 = vsub.f32 %v57, %v186
    %v188 = vand.u32 %v187, 4294901760
    %v189 = vsub.f32 %v187, %v188
    %v190 = vand.u32 %v189, 4294901760
    %191 = vmatpush1.msra.mxu0 %v190
    %192 = vmatprep.subr.mxu0 0.0
    %v193 = vand.u32 %v56, 4294901760
    %v194 = vsub.f32 %v56, %v193
    %v195 = vand.u32 %v194, 4294901760
    %v196 = vsub.f32 %v194, %v195
    %v197 = vand.u32 %v196, 4294901760
    %198 = vmatpush1.msra.mxu0 %v197
    %199 = vmatprep.subr.mxu0 0.0
    %v200 = vand.u32 %v55, 4294901760
    %v201 = vsub.f32 %v55, %v200
    %v202 = vand.u32 %v201, 4294901760
    %v203 = vsub.f32 %v201, %v202
    %v204 = vand.u32 %v203, 4294901760
    %205 = vmatpush1.msra.mxu0 %v204
    %206 = vmatprep.subr.mxu0 0.0
    %v207 = vand.u32 %v54, 4294901760
    %v208 = vsub.f32 %v54, %v207
    %v209 = vand.u32 %v208, 4294901760
    %v210 = vsub.f32 %v208, %v209
    %v211 = vand.u32 %v210, 4294901760
    %212 = vmatpush1.msra.mxu0 %v211
    %213 = vmatprep.subr.mxu0 0.0
    %v214 = vand.u32 %v53, 4294901760
    %v215 = vsub.f32 %v53, %v214
    %v216 = vand.u32 %v215, 4294901760
    %v217 = vsub.f32 %v215, %v216
    %v218 = vand.u32 %v217, 4294901760
    %219 = vmatpush1.msra.mxu0 %v218
    %220 = vmatprep.subr.mxu0 0.0
    %221 = vmatpush2.msra.mxu0 0.0
    %222 = vmatprep.subr.mxu0 0.0
    %223 = vmatpush2.msra.mxu0 0.0
    %224 = vmatprep.subr.mxu0 0.0
    %225 = vmatpush2.msra.mxu0 0.0
    %226 = vmatprep.subr.mxu0 0.0
    %227 = vmatpush2.msra.mxu0 0.0
    %228 = vmatprep.subr.mxu0 0.0
    %229 = vmatpush2.msra.mxu0 0.0
    %230 = vmatprep.subr.mxu0 0.0
    %231 = vmatpush2.msra.mxu0 0.0
    %232 = vmatprep.subr.mxu0 0.0
    %233 = vmatpush2.msra.mxu0 0.0
    %234 = vmatprep.subr.mxu0 0.0
    %235 = vmatpush2.msra.mxu0 0.0
    %236 = vmatprep.subr.mxu0 0.0
    %237 = vmatpush2.msra.mxu0 0.0
    %238 = vmatprep.subr.mxu0 0.0
    %239 = vmatpush2.msra.mxu0 0.0
    %240 = vmatprep.subr.mxu0 0.0
    %241 = vmatpush2.msra.mxu0 0.0
    %242 = vmatprep.subr.mxu0 0.0
    %243 = vmatpush2.msra.mxu0 0.0
    %244 = vmatprep.subr.mxu0 0.0
    %245 = vmatpush2.msra.mxu0 0.0
    %246 = vmatprep.subr.mxu0 0.0
    %247 = vmatpush2.msra.mxu0 0.0
    %248 = vmatprep.subr.mxu0 0.0
    %249 = vmatpush2.msra.mxu0 0.0
    %250 = vmatprep.subr.mxu0 0.0
    %251 = vmatpush2.msra.mxu0 0.0
    %252 = vmatprep.mubr.f32.mxu0 0.0
    %v253 = vand.u32 %v63, 4294901760
    %254 = vmatmul.mubr.f32.gmra.mxu0 %v253
    %v255 = vpop.f32.mrf.mxu0
    %v256 = vadd.f32 %v145, %v255
    %v257 = vpop.f32.mrf.mxu0
    %258 = vdwg.mxu0
    %259 = vmatprep.subr.mxu0 0.0
    %260 = vmatpush1.msra.mxu0 0.0
    %261 = vmatprep.subr.mxu0 0.0
    %262 = vmatpush1.msra.mxu0 0.0
    %263 = vmatprep.subr.mxu0 0.0
    %264 = vmatpush1.msra.mxu0 0.0
    %265 = vmatprep.subr.mxu0 0.0
    %266 = vmatpush1.msra.mxu0 0.0
    %267 = vmatprep.subr.mxu0 0.0
    %268 = vmatpush1.msra.mxu0 0.0
    %269 = vmatprep.subr.mxu0 0.0
    %270 = vmatpush1.msra.mxu0 0.0
    %271 = vmatprep.subr.mxu0 0.0
    %272 = vmatpush1.msra.mxu0 0.0
    %273 = vmatprep.subr.mxu0 0.0
    %274 = vmatpush1.msra.mxu0 0.0
    %275 = vmatprep.subr.mxu0 0.0
    %v276 = vand.u32 %v60, 4294901760
    %v277 = vsub.f32 %v60, %v276
    %278 = vmatpush1.msra.mxu0 %v277
    %279 = vmatprep.subr.mxu0 0.0
    %v280 = vand.u32 %v59, 4294901760
    %v281 = vsub.f32 %v59, %v280
    %282 = vmatpush1.msra.mxu0 %v281
    %283 = vmatprep.subr.mxu0 0.0
    %v284 = vand.u32 %v58, 4294901760
    %v285 = vsub.f32 %v58, %v284
    %286 = vmatpush1.msra.mxu0 %v285
    %287 = vmatprep.subr.mxu0 0.0
    %v288 = vand.u32 %v57, 4294901760
    %v289 = vsub.f32 %v57, %v288
    %290 = vmatpush1.msra.mxu0 %v289
    %291 = vmatprep.subr.mxu0 0.0
    %v292 = vand.u32 %v56, 4294901760
    %v293 = vsub.f32 %v56, %v292
    %294 = vmatpush1.msra.mxu0 %v293
    %295 = vmatprep.subr.mxu0 0.0
    %v296 = vand.u32 %v55, 4294901760
    %v297 = vsub.f32 %v55, %v296
    %298 = vmatpush1.msra.mxu0 %v297
    %299 = vmatprep.subr.mxu0 0.0
    %v300 = vand.u32 %v54, 4294901760
    %v301 = vsub.f32 %v54, %v300
    %302 = vmatpush1.msra.mxu0 %v301
    %303 = vmatprep.subr.mxu0 0.0
    %v304 = vand.u32 %v53, 4294901760
    %v305 = vsub.f32 %v53, %v304
    %306 = vmatpush1.msra.mxu0 %v305
    %307 = vmatprep.subr.mxu0 0.0
    %308 = vmatpush2.msra.mxu0 0.0
    %309 = vmatprep.subr.mxu0 0.0
    %310 = vmatpush2.msra.mxu0 0.0
    %311 = vmatprep.subr.mxu0 0.0
    %312 = vmatpush2.msra.mxu0 0.0
    %313 = vmatprep.subr.mxu0 0.0
    %314 = vmatpush2.msra.mxu0 0.0
    %315 = vmatprep.subr.mxu0 0.0
    %316 = vmatpush2.msra.mxu0 0.0
    %317 = vmatprep.subr.mxu0 0.0
    %318 = vmatpush2.msra.mxu0 0.0
    %319 = vmatprep.subr.mxu0 0.0
    %320 = vmatpush2.msra.mxu0 0.0
    %321 = vmatprep.subr.mxu0 0.0
    %322 = vmatpush2.msra.mxu0 0.0
    %323 = vmatprep.subr.mxu0 0.0
    %324 = vmatpush2.msra.mxu0 0.0
    %325 = vmatprep.subr.mxu0 0.0
    %326 = vmatpush2.msra.mxu0 0.0
    %327 = vmatprep.subr.mxu0 0.0
    %328 = vmatpush2.msra.mxu0 0.0
    %329 = vmatprep.subr.mxu0 0.0
    %330 = vmatpush2.msra.mxu0 0.0
    %331 = vmatprep.subr.mxu0 0.0
    %332 = vmatpush2.msra.mxu0 0.0
    %333 = vmatprep.subr.mxu0 0.0
    %334 = vmatpush2.msra.mxu0 0.0
    %335 = vmatprep.subr.mxu0 0.0
    %336 = vmatpush2.msra.mxu0 0.0
    %337 = vmatprep.subr.mxu0 0.0
    %338 = vmatpush2.msra.mxu0 0.0
    %339 = vmatprep.mubr.f32.mxu0 0.0
    %v340 = vand.u32 %v63, 4294901760
    %v341 = vsub.f32 %v63, %v340
    %342 = vmatmul.mubr.f32.gmra.mxu0 %v341
    %v343 = vpop.f32.mrf.mxu0
    %v344 = vadd.f32 %v256, %v343
    %v345 = vpop.f32.mrf.mxu0
    %346 = vdwg.mxu0
    %347 = vmatprep.subr.mxu0 0.0
    %348 = vmatpush1.msra.mxu0 0.0
    %349 = vmatprep.subr.mxu0 0.0
    %350 = vmatpush1.msra.mxu0 0.0
    %351 = vmatprep.subr.mxu0 0.0
    %352 = vmatpush1.msra.mxu0 0.0
    %353 = vmatprep.subr.mxu0 0.0
    %354 = vmatpush1.msra.mxu0 0.0
    %355 = vmatprep.subr.mxu0 0.0
    %356 = vmatpush1.msra.mxu0 0.0
    %357 = vmatprep.subr.mxu0 0.0
    %358 = vmatpush1.msra.mxu0 0.0
    %359 = vmatprep.subr.mxu0 0.0
    %360 = vmatpush1.msra.mxu0 0.0
    %361 = vmatprep.subr.mxu0 0.0
    %362 = vmatpush1.msra.mxu0 0.0
    %363 = vmatprep.subr.mxu0 0.0
    %v364 = vand.u32 %v60, 4294901760
    %365 = vmatpush1.msra.mxu0 %v364
    %366 = vmatprep.subr.mxu0 0.0
    %v367 = vand.u32 %v59, 4294901760
    %368 = vmatpush1.msra.mxu0 %v367
    %369 = vmatprep.subr.mxu0 0.0
    %v370 = vand.u32 %v58, 4294901760
    %371 = vmatpush1.msra.mxu0 %v370
    %372 = vmatprep.subr.mxu0 0.0
    %v373 = vand.u32 %v57, 4294901760
    %374 = vmatpush1.msra.mxu0 %v373
    %375 = vmatprep.subr.mxu0 0.0
    %v376 = vand.u32 %v56, 4294901760
    %377 = vmatpush1.msra.mxu0 %v376
    %378 = vmatprep.subr.mxu0 0.0
    %v379 = vand.u32 %v55, 4294901760
    %380 = vmatpush1.msra.mxu0 %v379
    %381 = vmatprep.subr.mxu0 0.0
    %v382 = vand.u32 %v54, 4294901760
    %383 = vmatpush1.msra.mxu0 %v382
    %384 = vmatprep.subr.mxu0 0.0
    %v385 = vand.u32 %v53, 4294901760
    %386 = vmatpush1.msra.mxu0 %v385
    %387 = vmatprep.subr.mxu0 0.0
    %388 = vmatpush2.msra.mxu0 0.0
    %389 = vmatprep.subr.mxu0 0.0
    %390 = vmatpush2.msra.mxu0 0.0
    %391 = vmatprep.subr.mxu0 0.0
    %392 = vmatpush2.msra.mxu0 0.0
    %393 = vmatprep.subr.mxu0 0.0
    %394 = vmatpush2.msra.mxu0 0.0
    %395 = vmatprep.subr.mxu0 0.0
    %396 = vmatpush2.msra.mxu0 0.0
    %397 = vmatprep.subr.mxu0 0.0
    %398 = vmatpush2.msra.mxu0 0.0
    %399 = vmatprep.subr.mxu0 0.0
    %400 = vmatpush2.msra.mxu0 0.0
    %401 = vmatprep.subr.mxu0 0.0
    %402 = vmatpush2.msra.mxu0 0.0
    %403 = vmatprep.subr.mxu0 0.0
    %404 = vmatpush2.msra.mxu0 0.0
    %405 = vmatprep.subr.mxu0 0.0
    %406 = vmatpush2.msra.mxu0 0.0
    %407 = vmatprep.subr.mxu0 0.0
    %408 = vmatpush2.msra.mxu0 0.0
    %409 = vmatprep.subr.mxu0 0.0
    %410 = vmatpush2.msra.mxu0 0.0
    %411 = vmatprep.subr.mxu0 0.0
    %412 = vmatpush2.msra.mxu0 0.0
    %413 = vmatprep.subr.mxu0 0.0
    %414 = vmatpush2.msra.mxu0 0.0
    %415 = vmatprep.subr.mxu0 0.0
    %416 = vmatpush2.msra.mxu0 0.0
    %417 = vmatprep.subr.mxu0 0.0
    %418 = vmatpush2.msra.mxu0 0.0
    %419 = vmatprep.mubr.f32.mxu0 0.0
    %v420 = vand.u32 %v63, 4294901760
    %v421 = vsub.f32 %v63, %v420
    %v422 = vand.u32 %v421, 4294901760
    %423 = vmatmul.mubr.f32.gmra.mxu0 %v422
    %v424 = vpop.f32.mrf.mxu0
    %v425 = vadd.f32 %v344, %v424
    %v426 = vpop.f32.mrf.mxu0
    %427 = vdwg.mxu0
    %428 = vmatprep.subr.mxu0 0.0
    %429 = vmatpush1.msra.mxu0 0.0
    %430 = vmatprep.subr.mxu0 0.0
    %431 = vmatpush1.msra.mxu0 0.0
    %432 = vmatprep.subr.mxu0 0.0
    %433 = vmatpush1.msra.mxu0 0.0
    %434 = vmatprep.subr.mxu0 0.0
    %435 = vmatpush1.msra.mxu0 0.0
    %436 = vmatprep.subr.mxu0 0.0
    %437 = vmatpush1.msra.mxu0 0.0
    %438 = vmatprep.subr.mxu0 0.0
    %439 = vmatpush1.msra.mxu0 0.0
    %440 = vmatprep.subr.mxu0 0.0
    %441 = vmatpush1.msra.mxu0 0.0
    %442 = vmatprep.subr.mxu0 0.0
    %443 = vmatpush1.msra.mxu0 0.0
    %444 = vmatprep.subr.mxu0 0.0
    %v445 = vand.u32 %v60, 4294901760
    %v446 = vsub.f32 %v60, %v445
    %v447 = vand.u32 %v446, 4294901760
    %448 = vmatpush1.msra.mxu0 %v447
    %449 = vmatprep.subr.mxu0 0.0
    %v450 = vand.u32 %v59, 4294901760
    %v451 = vsub.f32 %v59, %v450
    %v452 = vand.u32 %v451, 4294901760
    %453 = vmatpush1.msra.mxu0 %v452
    %454 = vmatprep.subr.mxu0 0.0
    %v455 = vand.u32 %v58, 4294901760
    %v456 = vsub.f32 %v58, %v455
    %v457 = vand.u32 %v456, 4294901760
    %458 = vmatpush1.msra.mxu0 %v457
    %459 = vmatprep.subr.mxu0 0.0
    %v460 = vand.u32 %v57, 4294901760
    %v461 = vsub.f32 %v57, %v460
    %v462 = vand.u32 %v461, 4294901760
    %463 = vmatpush1.msra.mxu0 %v462
    %464 = vmatprep.subr.mxu0 0.0
    %v465 = vand.u32 %v56, 4294901760
    %v466 = vsub.f32 %v56, %v465
    %v467 = vand.u32 %v466, 4294901760
    %468 = vmatpush1.msra.mxu0 %v467
    %469 = vmatprep.subr.mxu0 0.0
    %v470 = vand.u32 %v55, 4294901760
    %v471 = vsub.f32 %v55, %v470
    %v472 = vand.u32 %v471, 4294901760
    %473 = vmatpush1.msra.mxu0 %v472
    %474 = vmatprep.subr.mxu0 0.0
    %v475 = vand.u32 %v54, 4294901760
    %v476 = vsub.f32 %v54, %v475
    %v477 = vand.u32 %v476, 4294901760
    %478 = vmatpush1.msra.mxu0 %v477
    %479 = vmatprep.subr.mxu0 0.0
    %v480 = vand.u32 %v53, 4294901760
    %v481 = vsub.f32 %v53, %v480
    %v482 = vand.u32 %v481, 4294901760
    %483 = vmatpush1.msra.mxu0 %v482
    %484 = vmatprep.subr.mxu0 0.0
    %485 = vmatpush2.msra.mxu0 0.0
    %486 = vmatprep.subr.mxu0 0.0
    %487 = vmatpush2.msra.mxu0 0.0
    %488 = vmatprep.subr.mxu0 0.0
    %489 = vmatpush2.msra.mxu0 0.0
    %490 = vmatprep.subr.mxu0 0.0
    %491 = vmatpush2.msra.mxu0 0.0
    %492 = vmatprep.subr.mxu0 0.0
    %493 = vmatpush2.msra.mxu0 0.0
    %494 = vmatprep.subr.mxu0 0.0
    %495 = vmatpush2.msra.mxu0 0.0
    %496 = vmatprep.subr.mxu0 0.0
    %497 = vmatpush2.msra.mxu0 0.0
    %498 = vmatprep.subr.mxu0 0.0
    %499 = vmatpush2.msra.mxu0 0.0
    %500 = vmatprep.subr.mxu0 0.0
    %501 = vmatpush2.msra.mxu0 0.0
    %502 = vmatprep.subr.mxu0 0.0
    %503 = vmatpush2.msra.mxu0 0.0
    %504 = vmatprep.subr.mxu0 0.0
    %505 = vmatpush2.msra.mxu0 0.0
    %506 = vmatprep.subr.mxu0 0.0
    %507 = vmatpush2.msra.mxu0 0.0
    %508 = vmatprep.subr.mxu0 0.0
    %509 = vmatpush2.msra.mxu0 0.0
    %510 = vmatprep.subr.mxu0 0.0
    %511 = vmatpush2.msra.mxu0 0.0
    %512 = vmatprep.subr.mxu0 0.0
    %513 = vmatpush2.msra.mxu0 0.0
    %514 = vmatprep.subr.mxu0 0.0
    %515 = vmatpush2.msra.mxu0 0.0
    %516 = vmatprep.mubr.f32.mxu0 0.0
    %v517 = vand.u32 %v63, 4294901760
    %518 = vmatmul.mubr.f32.gmra.mxu0 %v517
    %v519 = vpop.f32.mrf.mxu0
    %v520 = vadd.f32 %v425, %v519
    %v521 = vpop.f32.mrf.mxu0
    %522 = vdwg.mxu0
    %523 = vmatprep.subr.mxu0 0.0
    %524 = vmatpush1.msra.mxu0 0.0
    %525 = vmatprep.subr.mxu0 0.0
    %526 = vmatpush1.msra.mxu0 0.0
    %527 = vmatprep.subr.mxu0 0.0
    %528 = vmatpush1.msra.mxu0 0.0
    %529 = vmatprep.subr.mxu0 0.0
    %530 = vmatpush1.msra.mxu0 0.0
    %531 = vmatprep.subr.mxu0 0.0
    %532 = vmatpush1.msra.mxu0 0.0
    %533 = vmatprep.subr.mxu0 0.0
    %534 = vmatpush1.msra.mxu0 0.0
    %535 = vmatprep.subr.mxu0 0.0
    %536 = vmatpush1.msra.mxu0 0.0
    %537 = vmatprep.subr.mxu0 0.0
    %538 = vmatpush1.msra.mxu0 0.0
    %539 = vmatprep.subr.mxu0 0.0
    %v540 = vand.u32 %v60, 4294901760
    %541 = vmatpush1.msra.mxu0 %v540
    %542 = vmatprep.subr.mxu0 0.0
    %v543 = vand.u32 %v59, 4294901760
    %544 = vmatpush1.msra.mxu0 %v543
    %545 = vmatprep.subr.mxu0 0.0
    %v546 = vand.u32 %v58, 4294901760
    %547 = vmatpush1.msra.mxu0 %v546
    %548 = vmatprep.subr.mxu0 0.0
    %v549 = vand.u32 %v57, 4294901760
    %550 = vmatpush1.msra.mxu0 %v549
    %551 = vmatprep.subr.mxu0 0.0
    %v552 = vand.u32 %v56, 4294901760
    %553 = vmatpush1.msra.mxu0 %v552
    %554 = vmatprep.subr.mxu0 0.0
    %v555 = vand.u32 %v55, 4294901760
    %556 = vmatpush1.msra.mxu0 %v555
    %557 = vmatprep.subr.mxu0 0.0
    %v558 = vand.u32 %v54, 4294901760
    %559 = vmatpush1.msra.mxu0 %v558
    %560 = vmatprep.subr.mxu0 0.0
    %v561 = vand.u32 %v53, 4294901760
    %562 = vmatpush1.msra.mxu0 %v561
    %563 = vmatprep.subr.mxu0 0.0
    %564 = vmatpush2.msra.mxu0 0.0
    %565 = vmatprep.subr.mxu0 0.0
    %566 = vmatpush2.msra.mxu0 0.0
    %567 = vmatprep.subr.mxu0 0.0
    %568 = vmatpush2.msra.mxu0 0.0
    %569 = vmatprep.subr.mxu0 0.0
    %570 = vmatpush2.msra.mxu0 0.0
    %571 = vmatprep.subr.mxu0 0.0
    %572 = vmatpush2.msra.mxu0 0.0
    %573 = vmatprep.subr.mxu0 0.0
    %574 = vmatpush2.msra.mxu0 0.0
    %575 = vmatprep.subr.mxu0 0.0
    %576 = vmatpush2.msra.mxu0 0.0
    %577 = vmatprep.subr.mxu0 0.0
    %578 = vmatpush2.msra.mxu0 0.0
    %579 = vmatprep.subr.mxu0 0.0
    %580 = vmatpush2.msra.mxu0 0.0
    %581 = vmatprep.subr.mxu0 0.0
    %582 = vmatpush2.msra.mxu0 0.0
    %583 = vmatprep.subr.mxu0 0.0
    %584 = vmatpush2.msra.mxu0 0.0
    %585 = vmatprep.subr.mxu0 0.0
    %586 = vmatpush2.msra.mxu0 0.0
    %587 = vmatprep.subr.mxu0 0.0
    %588 = vmatpush2.msra.mxu0 0.0
    %589 = vmatprep.subr.mxu0 0.0
    %590 = vmatpush2.msra.mxu0 0.0
    %591 = vmatprep.subr.mxu0 0.0
    %592 = vmatpush2.msra.mxu0 0.0
    %593 = vmatprep.subr.mxu0 0.0
    %594 = vmatpush2.msra.mxu0 0.0
    %595 = vmatprep.mubr.f32.mxu0 0.0
    %v596 = vand.u32 %v63, 4294901760
    %597 = vmatmul.mubr.f32.gmra.mxu0 %v596
    %v598 = vpop.f32.mrf.mxu0
    %v599 = vadd.f32 %v520, %v598
    %v600 = vpop.f32.mrf.mxu0
    %601 = vdwg.mxu0
    %v602 = vld [vmem:[%s1] sm:$0xff]
    %v603 = vadd.f32 %v602, %v599
    %604 = vst [vmem:[#allocation5] sm:$0xff] %v603
    // Predicated region
    $region18: #{tpu_custom_call.1} parent=1 // pred_check
      _
    $region19: #{tpu_custom_call.1} parent=1 // pred_check_branch
      %606 = sbr.rel (0) target = $region21
    $region20: #{tpu_custom_call.1} parent=1 // pred_region
      %s608 = ssub.s32 128, 128
      %609 = vsyncadd [#allocation4], %s608
      %s611 = sshll.u32 [#allocation5], 4
      %s612 = int_to_ptr.vmem [resolvable:$true] %s611
      %614 = dma.vmem_to_hbm [thread:$0]  %s612, 128, %s3, [#allocation4]
    $region21: #{tpu_custom_call.1} parent=1 // pred_fallthru
      _
    // Predicated region
    $region22: #{tpu_custom_call.1} parent=1 // pred_check
      _
    $region23: #{tpu_custom_call.1} parent=1 // pred_check_branch
      %616 = sbr.rel (0) target = $region25
    $region24: #{tpu_custom_call.1} parent=1 // pred_region
      %617 = dma.done [#allocation4], 128
    $region25: #{tpu_custom_call.1} parent=1 // pred_fallthru
      _
    %618 = vsyncpa [#allocation3], 1
    %619 = vsyncpa [#allocation4], 1

</llo_original>
